<compile_context>
chip_gen: v7x
topology: tpu7x:2x2x1
jax: 0.10.0
libtpu: 0.0.40
codegen_flags: <defaults>
</compile_context>

<pallas_src>
import jax
import jax.numpy as jnp
from jax import lax
from jax.experimental import pallas as pl
from jax.experimental.pallas import tpu as pltpu


# ----------------------------- fused kernel -----------------------------
def _make_fused_kernel(N, Cmid, HW, eps):
    inv_count = 1.0 / float(N * 4 * HW)          # count = N * Ho * Wo

    def kernel(x_ref, wd_ref, wc_ref, bc_ref, g_ref, b_ref,
               y_ref, z_sc, rsum_sc, rsq_sc):
        # x_ref   : (1, 4*Cin, HW)    4 shifted copies of x, spatial on lanes
        # wd_ref  : (4*Cmid, 4*Cin)   polyphase deconv weight
        # wc_ref  : (4*Ncls, 4*Cmid)  block-diagonal 1x1 conv weight
        # bc_ref  : (4*Ncls, 1)       1x1 conv bias (tiled per phase)
        # g_ref   : (Cmid, 1)         BN gamma
        # b_ref   : (Cmid, 1)         BN beta
        # y_ref   : (1, 4*Ncls, HW)   phase-interleaved output
        # z_sc    : (N, 4*Cmid, HW)   VMEM-resident deconv output (all batches)
        # rsum_sc : (4*Cmid, 1)       per-(phase,channel) running sum
        # rsq_sc  : (4*Cmid, 1)       per-(phase,channel) running sum of squares
        phase = pl.program_id(0)
        n = pl.program_id(1)

        @pl.when(jnp.logical_and(phase == 0, n == 0))
        def _():
            rsum_sc[...] = jnp.zeros_like(rsum_sc)
            rsq_sc[...] = jnp.zeros_like(rsq_sc)

        @pl.when(phase == 0)
        def _():
            # Polyphase deconv: one MXU contraction, result lane-dense (HW).
            z = jnp.dot(wd_ref[...], x_ref[0],
                        preferred_element_type=jnp.float32)   # (4*Cmid, HW)
            z_sc[n] = z
            rsum_sc[...] += jnp.sum(z, axis=1, keepdims=True)
            rsq_sc[...] += jnp.sum(z * z, axis=1, keepdims=True)

        @pl.when(phase == 1)
        def _():
            z = z_sc[n]                                        # (4*Cmid, HW)
            rs = rsum_sc[...]
            rq = rsq_sc[...]
            # Combine the 4 polyphase row groups -> per-channel batch stats.
            csum = (rs[0:Cmid] + rs[Cmid:2 * Cmid]
                    + rs[2 * Cmid:3 * Cmid] + rs[3 * Cmid:4 * Cmid])
            csq = (rq[0:Cmid] + rq[Cmid:2 * Cmid]
                   + rq[2 * Cmid:3 * Cmid] + rq[3 * Cmid:4 * Cmid])
            mean = csum * inv_count                            # (Cmid, 1)
            var = csq * inv_count - mean * mean                # biased variance
            inv = g_ref[...] * lax.rsqrt(var + eps)
            shift = b_ref[...] - mean * inv
            scale_rows = jnp.concatenate([inv, inv, inv, inv], axis=0)
            shift_rows = jnp.concatenate([shift, shift, shift, shift], axis=0)
            t = jnp.maximum(z * scale_rows + shift_rows, 0.0)  # BN + ReLU
            y = jnp.dot(wc_ref[...], t,
                        preferred_element_type=jnp.float32) + bc_ref[...]
            y_ref[0] = y                                       # lane-dense store

    return kernel


# ------------------------------- wrapper -------------------------------
def part_seg_head_forward(x_nchw, w_deconv, gamma, beta, w_conv, b_conv,
                          eps=1e-5):
    """Forward pass of PartSegHeadDeconvConv. Input/output are NCHW (f32)."""
    N, Cin, H, W = x_nchw.shape
    Cmid = w_deconv.shape[1]
    Ncls = w_conv.shape[0]
    HW = H * W

    # ---- glue: 4 shifted copies of x (polyphase taps), spatial flattened ----
    xf = x_nchw.astype(jnp.float32)
    x_pad = jnp.pad(xf, ((0, 0), (0, 0), (0, 1), (0, 1)))      # (N,Cin,H+1,W+1)
    shifts = [x_pad[:, :, a:a + H, b:b + W]
              for (a, b) in ((0, 0), (0, 1), (1, 0), (1, 1))]
    x_stack = jnp.concatenate(shifts, axis=1).reshape(N, 4 * Cin, HW)

    # ---- glue: polyphase deconv weight (4*Cmid, 4*Cin) ----
    # output phase p = 2a+b for output pixel (2m+a, 2n+b); input shift s:
    #   s=0 -> x[m,n], s=1 -> x[m,n+1], s=2 -> x[m+1,n], s=3 -> x[m+1,n+1]
    taps = {(0, 0): (1, 1),
            (1, 0): (1, 2), (1, 1): (1, 0),
            (2, 0): (2, 1), (2, 2): (0, 1),
            (3, 0): (2, 2), (3, 1): (2, 0), (3, 2): (0, 2), (3, 3): (0, 0)}
    w_all = jnp.zeros((4 * Cmid, 4 * Cin), jnp.float32)
    for (p, s), (kh, kw) in taps.items():
        w_all = w_all.at[p * Cmid:(p + 1) * Cmid,
                         s * Cin:(s + 1) * Cin].set(
            w_deconv[:, :, kh, kw].T.astype(jnp.float32))

    # ---- glue: block-diagonal 1x1 conv weight + tiled bias ----
    wc = w_conv[:, :, 0, 0].astype(jnp.float32)                # (Ncls, Cmid)
    wc_bd = jnp.kron(jnp.eye(4, dtype=jnp.float32), wc)        # (4*Ncls, 4*Cmid)
    bc = jnp.tile(b_conv.astype(jnp.float32).reshape(Ncls, 1), (4, 1))
    g2 = gamma.astype(jnp.float32).reshape(Cmid, 1)
    b2 = beta.astype(jnp.float32).reshape(Cmid, 1)

    kernel = _make_fused_kernel(N, Cmid, HW, eps)

    y_all = pl.pallas_call(
        kernel,
        out_shape=jax.ShapeDtypeStruct((N, 4 * Ncls, HW), jnp.float32),
        grid_spec=pltpu.PrefetchScalarGridSpec(
            num_scalar_prefetch=0,
            grid=(2, N),                                  # (phase, batch)
            in_specs=[
                # x only needed in phase 0; phase 1 parks on block 0.
                pl.BlockSpec((1, 4 * Cin, HW), lambda p, n: ((1 - p) * n, 0, 0)),
                pl.BlockSpec((4 * Cmid, 4 * Cin), lambda p, n: (0, 0)),
                pl.BlockSpec((4 * Ncls, 4 * Cmid), lambda p, n: (0, 0)),
                pl.BlockSpec((4 * Ncls, 1), lambda p, n: (0, 0)),
                pl.BlockSpec((Cmid, 1), lambda p, n: (0, 0)),
                pl.BlockSpec((Cmid, 1), lambda p, n: (0, 0)),
            ],
            # output block advances only in phase 1 -> no garbage writebacks
            # and each HBM block is written exactly once.
            out_specs=pl.BlockSpec((1, 4 * Ncls, HW),
                                   lambda p, n: (p * n, 0, 0)),
            scratch_shapes=[
                pltpu.VMEM((N, 4 * Cmid, HW), jnp.float32),   # resident z
                pltpu.VMEM((4 * Cmid, 1), jnp.float32),       # sum
                pltpu.VMEM((4 * Cmid, 1), jnp.float32),       # sum of squares
            ],
        ),
        # Stats accumulation + phase boundary require strict sequential order.
        compiler_params=pltpu.CompilerParams(
            dimension_semantics=("arbitrary", "arbitrary")),
    )(x_stack, w_all, wc_bd, bc, g2, b2)

    # ---- glue: de-interleave polyphase output -> (N, Ncls, 2H, 2W) ----
    y = y_all.reshape(N, 2, 2, Ncls, H, W)                    # (n, a, b, o, m, n')
    y = jnp.transpose(y, (0, 3, 4, 1, 5, 2)).reshape(N, Ncls, 2 * H, 2 * W)
    return y


# ------------------------- pure-JAX reference -------------------------
def _reference_forward(x, w_deconv, gamma, beta, w_conv, b_conv, eps=1e-5):
    # ConvTranspose2d == dilated regular conv with flipped/swapped kernel.
    wt = jnp.transpose(w_deconv[:, :, ::-1, ::-1], (1, 0, 2, 3))   # (Cmid,Cin,3,3)
    z = lax.conv_general_dilated(
        x, wt, window_strides=(1, 1), padding=((1, 2), (1, 2)),
        lhs_dilation=(2, 2), rhs_dilation=(1, 1),
        dimension_numbers=("NCHW", "OIHW", "NCHW"))
    mean = z.mean(axis=(0, 2, 3))
    var = ((z - mean[None, :, None, None]) ** 2).mean(axis=(0, 2, 3))  # biased
    zn = (z - mean[None, :, None, None]) / jnp.sqrt(var + eps)[None, :, None, None]
    zn = zn * gamma[None, :, None, None] + beta[None, :, None, None]
    t = jnp.maximum(zn, 0.0)
    y = jnp.einsum("nchw,oc->nohw", t, w_conv[:, :, 0, 0]) \
        + b_conv[None, :, None, None]
    return y


if __name__ == "__main__":
    # cfg: in_c=4, mid_c=8, num_classes=6; input 2x4x16x16
    N, in_c, mid_c, num_classes, H, W = 2, 4, 8, 6, 16, 16

    key = jax.random.PRNGKey(0)
    k_x, k_wd, k_wc = jax.random.split(key, 3)

    x = jax.random.normal(k_x, (N, in_c, H, W), dtype=jnp.float32)
    # nn.init.normal_(std=0.001) for deconv / conv weights; conv bias = 0;
    # BatchNorm default affine init: gamma=1, beta=0.
    w_deconv = 0.001 * jax.random.normal(k_wd, (in_c, mid_c, 3, 3), jnp.float32)
    w_conv = 0.001 * jax.random.normal(k_wc, (num_classes, mid_c, 1, 1), jnp.float32)
    b_conv = jnp.zeros((num_classes,), jnp.float32)
    gamma = jnp.ones((mid_c,), jnp.float32)
    beta = jnp.zeros((mid_c,), jnp.float32)

    y = part_seg_head_forward(x, w_deconv, gamma, beta, w_conv, b_conv)
    y = jax.block_until_ready(y)

    y_ref = _reference_forward(x, w_deconv, gamma, beta, w_conv, b_conv)
    assert y.shape == (N, num_classes, 2 * H, 2 * W)
    assert jnp.allclose(y, y_ref, rtol=1e-3, atol=1e-5), \
        f"max abs err {jnp.max(jnp.abs(y - y_ref))}"

    print("KERNEL_OK")
</pallas_src>

<mosaic_0001>
module attributes {stable_mosaic.version = 11 : i64} {
  func.func @kernel(%arg0: i32, %arg1: i32, %arg2: memref<1x16x256xf32, #tpu.memory_space<vmem>>, %arg3: memref<32x16xf32, #tpu.memory_space<vmem>>, %arg4: memref<24x32xf32, #tpu.memory_space<vmem>>, %arg5: memref<24x1xf32, #tpu.memory_space<vmem>>, %arg6: memref<8x1xf32, #tpu.memory_space<vmem>>, %arg7: memref<8x1xf32, #tpu.memory_space<vmem>>, %arg8: memref<1x24x256xf32, #tpu.memory_space<vmem>>, %arg9: memref<2x32x256xf32, #tpu.memory_space<vmem>>, %arg10: memref<32x1xf32, #tpu.memory_space<vmem>>, %arg11: memref<32x1xf32, #tpu.memory_space<vmem>>) attributes {dimension_semantics = [#tpu.dimension_semantics<arbitrary>, #tpu.dimension_semantics<arbitrary>], iteration_bounds = array<i64: 2, 2>, scalar_prefetch = 0 : i64, scratch_operands = 3 : i64, tpu.core_type = #tpu.core_type<tc>, window_params = [{transform_indices = @transform_0, window_bounds = array<i64: 1, 16, 256>}, {pipeline_mode = #tpu.pipeline_mode<synchronous>, transform_indices = @transform_1, window_bounds = array<i64: 32, 16>}, {pipeline_mode = #tpu.pipeline_mode<synchronous>, transform_indices = @transform_2, window_bounds = array<i64: 24, 32>}, {pipeline_mode = #tpu.pipeline_mode<synchronous>, transform_indices = @transform_3, window_bounds = array<i64: 24, 1>}, {pipeline_mode = #tpu.pipeline_mode<synchronous>, transform_indices = @transform_4, window_bounds = array<i64: 8, 1>}, {pipeline_mode = #tpu.pipeline_mode<synchronous>, transform_indices = @transform_5, window_bounds = array<i64: 8, 1>}, {transform_indices = @transform_6, window_bounds = array<i64: 1, 24, 256>}]} {
    %c0_i32 = arith.constant 0 : i32
    %0 = arith.cmpi eq, %arg0, %c0_i32 : i32
    %c0_i32_0 = arith.constant 0 : i32
    %1 = arith.cmpi eq, %arg1, %c0_i32_0 : i32
    %2 = arith.andi %0, %1 : i1
    %3 = arith.extui %2 : i1 to i32
    %c0_i32_1 = arith.constant 0 : i32
    %4 = arith.cmpi ne, %3, %c0_i32_1 : i32
    scf.if %4 {
      %cst = arith.constant 0.000000e+00 : f32
      %11 = vector.broadcast %cst : f32 to vector<32x1xf32>
      %c0 = arith.constant 0 : index
      %c0_5 = arith.constant 0 : index
      %12 = vector.load %arg10[%c0, %c0_5] : memref<32x1xf32, #tpu.memory_space<vmem>>, vector<32x1xf32>
      tpu.vector_store %arg10[%c0, %c0_5], %11 {strides = array<i32>} : memref<32x1xf32, #tpu.memory_space<vmem>>, vector<32x1xf32>,
      %cst_6 = arith.constant 0.000000e+00 : f32
      %13 = vector.broadcast %cst_6 : f32 to vector<32x1xf32>
      %c0_7 = arith.constant 0 : index
      %c0_8 = arith.constant 0 : index
      %14 = vector.load %arg11[%c0_7, %c0_8] : memref<32x1xf32, #tpu.memory_space<vmem>>, vector<32x1xf32>
      tpu.vector_store %arg11[%c0_7, %c0_8], %13 {strides = array<i32>} : memref<32x1xf32, #tpu.memory_space<vmem>>, vector<32x1xf32>,
    } else {
    }
    %c0_i32_2 = arith.constant 0 : i32
    %5 = arith.cmpi eq, %arg0, %c0_i32_2 : i32
    %6 = arith.extui %5 : i1 to i32
    %c0_i32_3 = arith.constant 0 : i32
    %7 = arith.cmpi ne, %6, %c0_i32_3 : i32
    scf.if %7 {
      %c0 = arith.constant 0 : index
      %c0_5 = arith.constant 0 : index
      %11 = vector.load %arg3[%c0, %c0_5] : memref<32x16xf32, #tpu.memory_space<vmem>>, vector<32x16xf32>
      %c0_6 = arith.constant 0 : index
      %c0_7 = arith.constant 0 : index
      %c0_8 = arith.constant 0 : index
      %12 = vector.load %arg2[%c0_6, %c0_7, %c0_8] : memref<1x16x256xf32, #tpu.memory_space<vmem>>, vector<1x16x256xf32>
      %13 = vector.shape_cast %12 : vector<1x16x256xf32> to vector<16x256xf32>
      %cst = arith.constant dense<0.000000e+00> : vector<32x256xf32>
      %14 = tpu.matmul %11, %13, %cst {dimension_numbers = #tpu.dot_dimension_numbers<[1], [0], [0], [1], [0, 0, 1, 1], [], []>} : vector<32x16xf32>, vector<16x256xf32>, vector<32x256xf32> -> vector<32x256xf32>
      %15 = arith.index_cast %arg1 : i32 to index
      %c0_9 = arith.constant 0 : index
      %c0_10 = arith.constant 0 : index
      %16 = vector.load %arg9[%15, %c0_9, %c0_10] : memref<2x32x256xf32, #tpu.memory_space<vmem>>, vector<1x32x256xf32>
      %17 = vector.shape_cast %16 : vector<1x32x256xf32> to vector<32x256xf32>
      %18 = vector.shape_cast %14 : vector<32x256xf32> to vector<1x32x256xf32>
      tpu.vector_store %arg9[%15, %c0_9, %c0_10], %18 {strides = array<i32>} : memref<2x32x256xf32, #tpu.memory_space<vmem>>, vector<1x32x256xf32>,
      %c0_11 = arith.constant 0 : index
      %c0_12 = arith.constant 0 : index
      %19 = vector.load %arg10[%c0_11, %c0_12] : memref<32x1xf32, #tpu.memory_space<vmem>>, vector<32x1xf32>
      %cst_13 = arith.constant dense<0.000000e+00> : vector<32xf32>
      %20 = vector.multi_reduction <add>, %14, %cst_13 [1] : vector<32x256xf32> to vector<32xf32>
      %21 = vector.shape_cast %20 : vector<32xf32> to vector<32x1xf32>
      %22 = arith.addf %19, %21 : vector<32x1xf32>
      %c0_14 = arith.constant 0 : index
      %c0_15 = arith.constant 0 : index
      %23 = vector.load %arg10[%c0_14, %c0_15] : memref<32x1xf32, #tpu.memory_space<vmem>>, vector<32x1xf32>
      tpu.vector_store %arg10[%c0_14, %c0_15], %22 {strides = array<i32>} : memref<32x1xf32, #tpu.memory_space<vmem>>, vector<32x1xf32>,
      %c0_16 = arith.constant 0 : index
      %c0_17 = arith.constant 0 : index
      %24 = vector.load %arg11[%c0_16, %c0_17] : memref<32x1xf32, #tpu.memory_space<vmem>>, vector<32x1xf32>
      %25 = arith.mulf %14, %14 : vector<32x256xf32>
      %cst_18 = arith.constant dense<0.000000e+00> : vector<32xf32>
      %26 = vector.multi_reduction <add>, %25, %cst_18 [1] : vector<32x256xf32> to vector<32xf32>
      %27 = vector.shape_cast %26 : vector<32xf32> to vector<32x1xf32>
      %28 = arith.addf %24, %27 : vector<32x1xf32>
      %c0_19 = arith.constant 0 : index
      %c0_20 = arith.constant 0 : index
      %29 = vector.load %arg11[%c0_19, %c0_20] : memref<32x1xf32, #tpu.memory_space<vmem>>, vector<32x1xf32>
      tpu.vector_store %arg11[%c0_19, %c0_20], %28 {strides = array<i32>} : memref<32x1xf32, #tpu.memory_space<vmem>>, vector<32x1xf32>,
    } else {
    }
    %c1_i32 = arith.constant 1 : i32
    %8 = arith.cmpi eq, %arg0, %c1_i32 : i32
    %9 = arith.extui %8 : i1 to i32
    %c0_i32_4 = arith.constant 0 : i32
    %10 = arith.cmpi ne, %9, %c0_i32_4 : i32
    scf.if %10 {
      %11 = arith.index_cast %arg1 : i32 to index
      %c0 = arith.constant 0 : index
      %c0_5 = arith.constant 0 : index
      %12 = vector.load %arg9[%11, %c0, %c0_5] : memref<2x32x256xf32, #tpu.memory_space<vmem>>, vector<1x32x256xf32>
      %13 = vector.shape_cast %12 : vector<1x32x256xf32> to vector<32x256xf32>
      %c0_6 = arith.constant 0 : index
      %c0_7 = arith.constant 0 : index
      %14 = vector.load %arg10[%c0_6, %c0_7] : memref<32x1xf32, #tpu.memory_space<vmem>>, vector<32x1xf32>
      %c0_8 = arith.constant 0 : index
      %c0_9 = arith.constant 0 : index
      %15 = vector.load %arg11[%c0_8, %c0_9] : memref<32x1xf32, #tpu.memory_space<vmem>>, vector<32x1xf32>
      %16 = vector.extract_strided_slice %14 {offsets = [0, 0], sizes = [8, 1], strides = [1, 1]} : vector<32x1xf32> to vector<8x1xf32>
      %17 = vector.extract_strided_slice %14 {offsets = [8, 0], sizes = [8, 1], strides = [1, 1]} : vector<32x1xf32> to vector<8x1xf32>
      %18 = arith.addf %16, %17 : vector<8x1xf32>
      %19 = vector.extract_strided_slice %14 {offsets = [16, 0], sizes = [8, 1], strides = [1, 1]} : vector<32x1xf32> to vector<8x1xf32>
      %20 = arith.addf %18, %19 : vector<8x1xf32>
      %21 = vector.extract_strided_slice %14 {offsets = [24, 0], sizes = [8, 1], strides = [1, 1]} : vector<32x1xf32> to vector<8x1xf32>
      %22 = arith.addf %20, %21 : vector<8x1xf32>
      %23 = vector.extract_strided_slice %15 {offsets = [0, 0], sizes = [8, 1], strides = [1, 1]} : vector<32x1xf32> to vector<8x1xf32>
      %24 = vector.extract_strided_slice %15 {offsets = [8, 0], sizes = [8, 1], strides = [1, 1]} : vector<32x1xf32> to vector<8x1xf32>
      %25 = arith.addf %23, %24 : vector<8x1xf32>
      %26 = vector.extract_strided_slice %15 {offsets = [16, 0], sizes = [8, 1], strides = [1, 1]} : vector<32x1xf32> to vector<8x1xf32>
      %27 = arith.addf %25, %26 : vector<8x1xf32>
      %28 = vector.extract_strided_slice %15 {offsets = [24, 0], sizes = [8, 1], strides = [1, 1]} : vector<32x1xf32> to vector<8x1xf32>
      %29 = arith.addf %27, %28 : vector<8x1xf32>
      %cst = arith.constant 4.8828125E-4 : f32
      %30 = vector.broadcast %cst : f32 to vector<8x1xf32>
      %31 = arith.mulf %22, %30 : vector<8x1xf32>
      %cst_10 = arith.constant 4.8828125E-4 : f32
      %32 = vector.broadcast %cst_10 : f32 to vector<8x1xf32>
      %33 = arith.mulf %29, %32 : vector<8x1xf32>
      %34 = arith.mulf %31, %31 : vector<8x1xf32>
      %35 = arith.subf %33, %34 : vector<8x1xf32>
      %c0_11 = arith.constant 0 : index
      %c0_12 = arith.constant 0 : index
      %36 = vector.load %arg6[%c0_11, %c0_12] : memref<8x1xf32, #tpu.memory_space<vmem>>, vector<8x1xf32>
      %cst_13 = arith.constant 9.99999974E-6 : f32
      %37 = vector.broadcast %cst_13 : f32 to vector<8x1xf32>
      %38 = arith.addf %35, %37 : vector<8x1xf32>
      %39 = math.rsqrt %38 : vector<8x1xf32>
      %40 = arith.mulf %36, %39 : vector<8x1xf32>
      %c0_14 = arith.constant 0 : index
      %c0_15 = arith.constant 0 : index
      %41 = vector.load %arg7[%c0_14, %c0_15] : memref<8x1xf32, #tpu.memory_space<vmem>>, vector<8x1xf32>
      %42 = arith.mulf %31, %40 : vector<8x1xf32>
      %43 = arith.subf %41, %42 : vector<8x1xf32>
      %44 = tpu.concatenate %40, %40, %40, %40 in 0 : vector<8x1xf32>, vector<8x1xf32>, vector<8x1xf32>, vector<8x1xf32> -> vector<32x1xf32>
      %45 = tpu.concatenate %43, %43, %43, %43 in 0 : vector<8x1xf32>, vector<8x1xf32>, vector<8x1xf32>, vector<8x1xf32> -> vector<32x1xf32>
      %46 = vector.broadcast %44 : vector<32x1xf32> to vector<32x256xf32>
      %47 = arith.mulf %13, %46 : vector<32x256xf32>
      %48 = vector.broadcast %45 : vector<32x1xf32> to vector<32x256xf32>
      %49 = arith.addf %47, %48 : vector<32x256xf32>
      %cst_16 = arith.constant 0.000000e+00 : f32
      %50 = vector.broadcast %cst_16 : f32 to vector<32x256xf32>
      %51 = arith.maximumf %49, %50 : vector<32x256xf32>
      %c0_17 = arith.constant 0 : index
      %c0_18 = arith.constant 0 : index
      %52 = vector.load %arg4[%c0_17, %c0_18] : memref<24x32xf32, #tpu.memory_space<vmem>>, vector<24x32xf32>
      %cst_19 = arith.constant dense<0.000000e+00> : vector<24x256xf32>
      %53 = tpu.matmul %52, %51, %cst_19 {dimension_numbers = #tpu.dot_dimension_numbers<[1], [0], [0], [1], [0, 0, 1, 1], [], []>} : vector<24x32xf32>, vector<32x256xf32>, vector<24x256xf32> -> vector<24x256xf32>
      %c0_20 = arith.constant 0 : index
      %c0_21 = arith.constant 0 : index
      %54 = vector.load %arg5[%c0_20, %c0_21] : memref<24x1xf32, #tpu.memory_space<vmem>>, vector<24x1xf32>
      %55 = vector.broadcast %54 : vector<24x1xf32> to vector<24x256xf32>
      %56 = arith.addf %53, %55 : vector<24x256xf32>
      %c0_22 = arith.constant 0 : index
      %c0_23 = arith.constant 0 : index
      %c0_24 = arith.constant 0 : index
      %57 = vector.load %arg8[%c0_22, %c0_23, %c0_24] : memref<1x24x256xf32, #tpu.memory_space<vmem>>, vector<1x24x256xf32>
      %58 = vector.shape_cast %57 : vector<1x24x256xf32> to vector<24x256xf32>
      %59 = vector.shape_cast %56 : vector<24x256xf32> to vector<1x24x256xf32>
      tpu.vector_store %arg8[%c0_22, %c0_23, %c0_24], %59 {strides = array<i32>} : memref<1x24x256xf32, #tpu.memory_space<vmem>>, vector<1x24x256xf32>,
    } else {
    }
    return
  }
  func.func @transform_0(%arg0: i32, %arg1: i32) -> (i32, i32, i32) {
    %c1_i32 = arith.constant 1 : i32
    %0 = arith.subi %c1_i32, %arg0 : i32
    %1 = arith.muli %0, %arg1 : i32
    %c0_i32 = arith.constant 0 : i32
    %c0_i32_0 = arith.constant 0 : i32
    %c0_i32_1 = arith.constant 0 : i32
    return %1, %c0_i32, %c0_i32_0 : i32, i32, i32
  }
  func.func @transform_1(%arg0: i32, %arg1: i32) -> (i32, i32) {
    %c0_i32 = arith.constant 0 : i32
    %c0_i32_0 = arith.constant 0 : i32
    %c0_i32_1 = arith.constant 0 : i32
    return %c0_i32, %c0_i32_0 : i32, i32
  }
  func.func @transform_2(%arg0: i32, %arg1: i32) -> (i32, i32) {
    %c0_i32 = arith.constant 0 : i32
    %c0_i32_0 = arith.constant 0 : i32
    %c0_i32_1 = arith.constant 0 : i32
    return %c0_i32, %c0_i32_0 : i32, i32
  }
  func.func @transform_3(%arg0: i32, %arg1: i32) -> (i32, i32) {
    %c0_i32 = arith.constant 0 : i32
    %c0_i32_0 = arith.constant 0 : i32
    %c0_i32_1 = arith.constant 0 : i32
    return %c0_i32, %c0_i32_0 : i32, i32
  }
  func.func @transform_4(%arg0: i32, %arg1: i32) -> (i32, i32) {
    %c0_i32 = arith.constant 0 : i32
    %c0_i32_0 = arith.constant 0 : i32
    %c0_i32_1 = arith.constant 0 : i32
    return %c0_i32, %c0_i32_0 : i32, i32
  }
  func.func @transform_5(%arg0: i32, %arg1: i32) -> (i32, i32) {
    %c0_i32 = arith.constant 0 : i32
    %c0_i32_0 = arith.constant 0 : i32
    %c0_i32_1 = arith.constant 0 : i32
    return %c0_i32, %c0_i32_0 : i32, i32
  }
  func.func @transform_6(%arg0: i32, %arg1: i32) -> (i32, i32, i32) {
    %0 = arith.muli %arg0, %arg1 : i32
    %c0_i32 = arith.constant 0 : i32
    %c0_i32_0 = arith.constant 0 : i32
    %c0_i32_1 = arith.constant 0 : i32
    return %0, %c0_i32, %c0_i32_0 : i32, i32, i32
  }
}

</mosaic_0001>

<llo_original>
// kernel: tpu_custom_call.1
$region0: #{tpu_custom_call.1}
  #allocation0 [shape = 'u32[]', space=smem, size = 0x4, offset = 0x4, fixed_abs, tag = 'smem constant byte address 0x4 - core index']
  #allocation1 [shape = 'u32[144,128]{1,0:T(1,128)}', space=vmem, size = 0x12000, scoped, tag = 'internal scratch']
  #allocation2 [shape = 'f32[2,32,256]{2,1,0:T(8,128)}', space=vmem, size = 0x10000, scoped, tag = 'scratch operand']
  #allocation3 [shape = 'f32[32,1]{1,0:T(8,128)}', space=vmem, size = 0x4000, scoped, tag = 'scratch operand']
  #allocation4 [shape = 'f32[32,1]{1,0:T(8,128)}', space=vmem, size = 0x4000, scoped, tag = 'scratch operand']
  %s0 = inlined_call_operand.vmem [shape: f32[2,16,256], index: 0, kind: input, shape index: {}]
  %s1 = inlined_call_operand.vmem [shape: f32[32,16], index: 1, kind: input, shape index: {}]
  %s2 = inlined_call_operand.vmem [shape: f32[24,32], index: 2, kind: input, shape index: {}]
  %s3 = inlined_call_operand.vmem [shape: f32[24,1], index: 3, kind: input, shape index: {}]
  %s4 = inlined_call_operand.vmem [shape: f32[8,1], index: 4, kind: input, shape index: {}]
  %s5 = inlined_call_operand.vmem [shape: f32[8,1], index: 5, kind: input, shape index: {}]
  %s6 = inlined_call_operand.hbm [shape: f32[2,24,256], index: 6, kind: output, shape index: {}]
  %s7 = sld [smem:[#allocation0]]
  $region69: #{tpu_custom_call.1} parent=0
    _
  %s9 = ssub.s32 1, %s7
  %s10 = scalar_select 0, %s9, %s7
  $region1: #{tpu_custom_call.1} parent=0
    #allocation5 [shape = 'u8[49152]{0}', space=vmem, size = 0xc000, scoped, tag = 'output window, operand 0']
    #allocation6 [shape = 's32[2]{0}', space=sflag, size = 0x8, scoped, tag = 'scoped memory for tpu_custom_call.1']
    %11 = vsyncpa [#allocation6], 0
    %s12 = scalar_lea.sflag [#allocation6], 1
    %13 = vsyncpa %s12, 0
    loop: start=0, step=1, limit=6
    $region2: #{tpu_custom_call.1} parent=1 // loop_pre_header
      _
    $region3: #{tpu_custom_call.1} parent=1 // loop_header
      %s15 = sphi 0, %s19
      %p16 = scmp.ge.s32.totalorder %s15, 6
      %s22 = sphi 0, %s34
      %s23 = sphi 0, %s30
      %s24 = sphi 0, %s22
      %s25 = sphi 0, %s23
      %s26 = sphi 0, %s24
      %s27 = sphi 0, %s25
      %s41 = sphi 0, %s43
      %s44 = sphi 0, %s41
      %s45 = sphi 0, %s44
      %s61 = sphi 0, %s45
      %s65 = sphi 0, %s65
      %s67 = sphi 0, %s65
      %s68 = sphi 0, %s67
      %s82 = sphi 0, %s68
      %s86 = sphi 0, %s86
      %s88 = sphi 0, %s86
      %s89 = sphi 0, %s88
      %s103 = sphi 0, %s89
      %s107 = sphi 0, %s107
      %s109 = sphi 0, %s107
      %s110 = sphi 0, %s109
      %s124 = sphi 0, %s110
      %s128 = sphi 0, %s128
      %s130 = sphi 0, %s128
      %s131 = sphi 0, %s130
      %s145 = sphi 0, %s131
      %s149 = sphi 0, %s149
      %s151 = sphi 0, %s149
      %s152 = sphi 0, %s151
      %s166 = sphi 0, %s152
      %s174 = sphi 0, %s176
      %s177 = sphi 0, %s174
      %s178 = sphi 0, %s177
      %s194 = sphi 0, %s178
    $region4: #{tpu_custom_call.1} parent=1 // loop_header_branch
      %18 = sbr.rel (%p16) target = $region8
    $region5: #{tpu_custom_call.1} parent=1 // loop_body
      %s20 = ssub.s32 %s15, 1
      %s21 = ssub.s32 %s15, 2
      %s28 = sadd.s32 1, %s23
      %p29 = scmp.ge.s32.totalorder %s28, 2
      %s30 = scalar_select %p29, 0, %s28
      %s31 = sadd.s32 1, %s22
      %s32 = scalar_select %p29, %s31, %s22
      %p33 = scmp.ge.s32.totalorder %s32, 2
      %s34 = scalar_select %p33, 0, %s32
      %s35 = ssub.s32 1, %s22
      %s36 = smul.u32 %s35, %s23
      %s37 = ssub.s32 1, %s34
      %s38 = smul.u32 %s37, %s30
      %s39 = ssub.s32 %s36, %s38
      %p40 = scmp.eq.s32.totalorder %s39, 0
      %s42 = sadd.s32 %s41, 1
      %s43 = scalar_select %p40, %s41, %s42
      %p46 = pneg %p40
      %p47 = scmp.eq.s32.totalorder %s15, 3
      %p48 = por %p46, %p47
      %p49 = scmp.ne.s32.totalorder %s41, %s44
      %p50 = scmp.eq.s32.totalorder %s15, 0
      %p51 = por %p49, %p50
      %p52 = scmp.ne.s32.totalorder %s41, %s44
      %p53 = scmp.eq.s32.totalorder %s20, 3
      %p54 = por %p52, %p53
      %p55 = scmp.ne.s32.totalorder %s44, %s45
      %p56 = scmp.eq.s32.totalorder %s20, 0
      %p57 = por %p55, %p56
      %p58 = scmp.ne.s32.totalorder %s44, %s45
      %p59 = scmp.eq.s32.totalorder %s21, 3
      %p60 = por %p58, %p59
      %p62 = scmp.ne.s32.totalorder %s45, %s61
      %p63 = scmp.eq.s32.totalorder %s21, 0
      %p64 = por %p62, %p63
      %s66 = sadd.s32 %s65, 1
      %p69 = scmp.eq.s32.totalorder %s15, 3
      %p70 = scmp.ne.s32.totalorder %s65, %s67
      %p71 = scmp.eq.s32.totalorder %s15, 0
      %p72 = por %p70, %p71
      %p73 = scmp.ne.s32.totalorder %s65, %s67
      %p74 = scmp.eq.s32.totalorder %s20, 3
      %p75 = por %p73, %p74
      %p76 = scmp.ne.s32.totalorder %s67, %s68
      %p77 = scmp.eq.s32.totalorder %s20, 0
      %p78 = por %p76, %p77
      %p79 = scmp.ne.s32.totalorder %s67, %s68
      %p80 = scmp.eq.s32.totalorder %s21, 3
      %p81 = por %p79, %p80
      %p83 = scmp.ne.s32.totalorder %s68, %s82
      %p84 = scmp.eq.s32.totalorder %s21, 0
      %p85 = por %p83, %p84
      %s87 = sadd.s32 %s86, 1
      %p90 = scmp.eq.s32.totalorder %s15, 3
      %p91 = scmp.ne.s32.totalorder %s86, %s88
      %p92 = scmp.eq.s32.totalorder %s15, 0
      %p93 = por %p91, %p92
      %p94 = scmp.ne.s32.totalorder %s86, %s88
      %p95 = scmp.eq.s32.totalorder %s20, 3
      %p96 = por %p94, %p95
      %p97 = scmp.ne.s32.totalorder %s88, %s89
      %p98 = scmp.eq.s32.totalorder %s20, 0
      %p99 = por %p97, %p98
      %p100 = scmp.ne.s32.totalorder %s88, %s89
      %p101 = scmp.eq.s32.totalorder %s21, 3
      %p102 = por %p100, %p101
      %p104 = scmp.ne.s32.totalorder %s89, %s103
      %p105 = scmp.eq.s32.totalorder %s21, 0
      %p106 = por %p104, %p105
      %s108 = sadd.s32 %s107, 1
      %p111 = scmp.eq.s32.totalorder %s15, 3
      %p112 = scmp.ne.s32.totalorder %s107, %s109
      %p113 = scmp.eq.s32.totalorder %s15, 0
      %p114 = por %p112, %p113
      %p115 = scmp.ne.s32.totalorder %s107, %s109
      %p116 = scmp.eq.s32.totalorder %s20, 3
      %p117 = por %p115, %p116
      %p118 = scmp.ne.s32.totalorder %s109, %s110
      %p119 = scmp.eq.s32.totalorder %s20, 0
      %p120 = por %p118, %p119
      %p121 = scmp.ne.s32.totalorder %s109, %s110
      %p122 = scmp.eq.s32.totalorder %s21, 3
      %p123 = por %p121, %p122
      %p125 = scmp.ne.s32.totalorder %s110, %s124
      %p126 = scmp.eq.s32.totalorder %s21, 0
      %p127 = por %p125, %p126
      %s129 = sadd.s32 %s128, 1
      %p132 = scmp.eq.s32.totalorder %s15, 3
      %p133 = scmp.ne.s32.totalorder %s128, %s130
      %p134 = scmp.eq.s32.totalorder %s15, 0
      %p135 = por %p133, %p134
      %p136 = scmp.ne.s32.totalorder %s128, %s130
      %p137 = scmp.eq.s32.totalorder %s20, 3
      %p138 = por %p136, %p137
      %p139 = scmp.ne.s32.totalorder %s130, %s131
      %p140 = scmp.eq.s32.totalorder %s20, 0
      %p141 = por %p139, %p140
      %p142 = scmp.ne.s32.totalorder %s130, %s131
      %p143 = scmp.eq.s32.totalorder %s21, 3
      %p144 = por %p142, %p143
      %p146 = scmp.ne.s32.totalorder %s131, %s145
      %p147 = scmp.eq.s32.totalorder %s21, 0
      %p148 = por %p146, %p147
      %s150 = sadd.s32 %s149, 1
      %p153 = scmp.eq.s32.totalorder %s15, 3
      %p154 = scmp.ne.s32.totalorder %s149, %s151
      %p155 = scmp.eq.s32.totalorder %s15, 0
      %p156 = por %p154, %p155
      %p157 = scmp.ne.s32.totalorder %s149, %s151
      %p158 = scmp.eq.s32.totalorder %s20, 3
      %p159 = por %p157, %p158
      %p160 = scmp.ne.s32.totalorder %s151, %s152
      %p161 = scmp.eq.s32.totalorder %s20, 0
      %p162 = por %p160, %p161
      %p163 = scmp.ne.s32.totalorder %s151, %s152
      %p164 = scmp.eq.s32.totalorder %s21, 3
      %p165 = por %p163, %p164
      %p167 = scmp.ne.s32.totalorder %s152, %s166
      %p168 = scmp.eq.s32.totalorder %s21, 0
      %p169 = por %p167, %p168
      %s170 = smul.u32 %s22, %s23
      %s171 = smul.u32 %s34, %s30
      %s172 = ssub.s32 %s170, %s171
      %p173 = scmp.eq.s32.totalorder %s172, 0
      %s175 = sadd.s32 %s174, 1
      %s176 = scalar_select %p173, %s174, %s175
      %p179 = pneg %p173
      %p180 = scmp.eq.s32.totalorder %s15, 3
      %p181 = por %p179, %p180
      %p182 = scmp.ne.s32.totalorder %s174, %s177
      %p183 = scmp.eq.s32.totalorder %s15, 0
      %p184 = por %p182, %p183
      %p185 = scmp.ne.s32.totalorder %s174, %s177
      %p186 = scmp.eq.s32.totalorder %s20, 3
      %p187 = por %p185, %p186
      %p188 = scmp.ne.s32.totalorder %s177, %s178
      %p189 = scmp.eq.s32.totalorder %s20, 0
      %p190 = por %p188, %p189
      %p191 = scmp.ne.s32.totalorder %s177, %s178
      %p192 = scmp.eq.s32.totalorder %s21, 3
      %p193 = por %p191, %p192
      %p195 = scmp.ne.s32.totalorder %s178, %s194
      %p196 = scmp.eq.s32.totalorder %s21, 0
      %p197 = por %p195, %p196
      %p198 = scmp.le.s32.totalorder 1, %s15
      %p199 = scmp.lt.s32.totalorder %s15, 5
      %p200 = pnand %p198, %p199
      %p201 = pneg %p200
      // Predicated region
      $region9: #{tpu_custom_call.1} parent=5 // pred_check
        _
      $region10: #{tpu_custom_call.1} parent=5 // pred_check_branch
        %203 = sbr.rel (%p200) target = $region12
      $region11: #{tpu_custom_call.1} parent=5 // pred_region
        %s204 = ssub.s32 %s15, 1
        // Predicated region
        $region13: #{tpu_custom_call.1} parent=11 // pred_check
          %p205 = pneg %p78
        $region14: #{tpu_custom_call.1} parent=11 // pred_check_branch
          %207 = sbr.rel (%p205) target = $region16
        $region15: #{tpu_custom_call.1} parent=11 // pred_region
          _
        $region16: #{tpu_custom_call.1} parent=11 // pred_fallthru
          _
        // Predicated region
        $region17: #{tpu_custom_call.1} parent=11 // pred_check
          %p208 = pneg %p99
        $region18: #{tpu_custom_call.1} parent=11 // pred_check_branch
          %210 = sbr.rel (%p208) target = $region20
        $region19: #{tpu_custom_call.1} parent=11 // pred_region
          _
        $region20: #{tpu_custom_call.1} parent=11 // pred_fallthru
          _
        // Predicated region
        $region21: #{tpu_custom_call.1} parent=11 // pred_check
          %p211 = pneg %p120
        $region22: #{tpu_custom_call.1} parent=11 // pred_check_branch
          %213 = sbr.rel (%p211) target = $region24
        $region23: #{tpu_custom_call.1} parent=11 // pred_region
          _
        $region24: #{tpu_custom_call.1} parent=11 // pred_fallthru
          _
        // Predicated region
        $region25: #{tpu_custom_call.1} parent=11 // pred_check
          %p214 = pneg %p141
        $region26: #{tpu_custom_call.1} parent=11 // pred_check_branch
          %216 = sbr.rel (%p214) target = $region28
        $region27: #{tpu_custom_call.1} parent=11 // pred_region
          _
        $region28: #{tpu_custom_call.1} parent=11 // pred_fallthru
          _
        // Predicated region
        $region29: #{tpu_custom_call.1} parent=11 // pred_check
          %p217 = pneg %p162
        $region30: #{tpu_custom_call.1} parent=11 // pred_check_branch
          %219 = sbr.rel (%p217) target = $region32
        $region31: #{tpu_custom_call.1} parent=11 // pred_region
          _
        $region32: #{tpu_custom_call.1} parent=11 // pred_fallthru
          _
      $region12: #{tpu_custom_call.1} parent=5 // pred_fallthru
        _
      %p220 = scmp.lt.s32.totalorder %s15, 4
      // Predicated region
      $region33: #{tpu_custom_call.1} parent=5 // pred_check
        %p221 = pneg %p220
      $region34: #{tpu_custom_call.1} parent=5 // pred_check_branch
        %223 = sbr.rel (%p221) target = $region36
      $region35: #{tpu_custom_call.1} parent=5 // pred_region
        // Predicated region
        $region37: #{tpu_custom_call.1} parent=35 // pred_check
          %p224 = pneg %p51
        $region38: #{tpu_custom_call.1} parent=35 // pred_check_branch
          %226 = sbr.rel (%p224) target = $region40
        $region39: #{tpu_custom_call.1} parent=35 // pred_region
          %s227 = ssub.s32 1, %s22
          %s228 = smul.u32 %s227, %s23
          %p229 = scmp.lt.s32.totalorder %s228, 1
          %s230 = scalar_select %p229, %s228, 1
          %s231 = smul.addr %s230, 4
          %s232 = smul.addr %s231, 8
          %s233 = scalar_lea.vmem %s0, %s232
          %s234 = ssub.s32 1, %s22
          %s235 = smul.u32 %s234, %s23
        $region40: #{tpu_custom_call.1} parent=35 // pred_fallthru
          _
      $region36: #{tpu_custom_call.1} parent=5 // pred_fallthru
        _
      %p236 = scmp.le.s32.totalorder 1, %s15
      %p237 = scmp.lt.s32.totalorder %s15, 5
      %p238 = pnand %p236, %p237
      %p239 = pneg %p238
      // Predicated region
      $region41: #{tpu_custom_call.1} parent=5 // pred_check
        _
      $region42: #{tpu_custom_call.1} parent=5 // pred_check_branch
        %241 = sbr.rel (%p238) target = $region44
      $region43: #{tpu_custom_call.1} parent=5 // pred_region
        %s242 = ssub.s32 %s15, 1
        %s243 = ssub.s32 1, %s24
        %s244 = smul.u32 %s243, %s25
        %p245 = scmp.lt.s32.totalorder %s244, 1
        %s246 = scalar_select %p245, %s244, 1
        %s247 = smul.addr %s246, 4
        %s248 = smul.addr %s247, 8
        %s249 = scalar_lea.vmem %s0, %s248
        %p250 = pneg %p57
        %p251 = pneg %p54
        %p252 = pneg %p78
        %p253 = pneg %p75
        %p254 = pneg %p99
        %p255 = pneg %p96
        %p256 = pneg %p120
        %p257 = pneg %p117
        %p258 = pneg %p141
        %p259 = pneg %p138
        %p260 = pneg %p162
        %p261 = pneg %p159
        %p262 = pneg %p190
        %p263 = pneg %p187
        %s264 = sand.u32 %s177, 1
        %s265 = scalar_lea.sflag [#allocation6], %s264
        %s266 = sand.u32 %s177, 1
        %s267 = smul.addr %s266, 48
        %s268 = scalar_lea.vmem [#allocation5], %s267
        %s269 = ssub.s32 1, %s24
        %s270 = smul.u32 %s269, %s25
        %p271 = scmp.lt.s32.totalorder %s270, 1
        %s272 = scalar_select %p271, %s270, 1
        %s273 = smul.addr %s272, 4
        %s274 = smul.addr %s273, 8
        %s275 = scalar_lea.vmem %s0, %s274
        %s276 = ssub.s32 1, %s24
        %s277 = smul.u32 %s276, %s25
        %s278 = smul.u32 %s24, %s25
        %p279 = scmp.eq.s32.totalorder %s24, 0
        %p280 = scmp.eq.s32.totalorder %s25, 0
        %p281 = pnand %p279, %p280
        %p282 = pneg %p281
        // Predicated region
        $region45: #{tpu_custom_call.1} parent=43 // pred_check
          _
        $region46: #{tpu_custom_call.1} parent=43 // pred_check_branch
          %284 = sbr.rel (%p281) target = $region48
        $region47: #{tpu_custom_call.1} parent=43 // pred_region
          %vm285 = vcmask 7168
          %286 = vst.msk [vmem:[#allocation3] sm:$0xff] %vm285, 0.0
          %287 = vst.msk [vmem:[#allocation3 + $0x8] sm:$0xff] %vm285, 0.0
          %288 = vst.msk [vmem:[#allocation3 + $0x10] sm:$0xff] %vm285, 0.0
          %289 = vst.msk [vmem:[#allocation3 + $0x18] sm:$0xff] %vm285, 0.0
          %290 = vst.msk [vmem:[#allocation4] sm:$0xff] %vm285, 0.0
          %291 = vst.msk [vmem:[#allocation4 + $0x8] sm:$0xff] %vm285, 0.0
          %292 = vst.msk [vmem:[#allocation4 + $0x10] sm:$0xff] %vm285, 0.0
          %293 = vst.msk [vmem:[#allocation4 + $0x18] sm:$0xff] %vm285, 0.0
        $region48: #{tpu_custom_call.1} parent=43 // pred_fallthru
          _
        // Predicated region
        $region49: #{tpu_custom_call.1} parent=43 // pred_check
          %p294 = pneg %p279
        $region50: #{tpu_custom_call.1} parent=43 // pred_check_branch
          %296 = sbr.rel (%p294) target = $region52
        $region51: #{tpu_custom_call.1} parent=43 // pred_region
          %v297 = vld [vmem:[%s1] sm:$0xff]
          %v298 = vld [vmem:[%s1 + $0x8] sm:$0xff]
          %v299 = vld [vmem:[%s1 + $0x10] sm:$0xff]
          %v300 = vld [vmem:[%s1 + $0x18] sm:$0xff]
          %v301 = vld [vmem:[%s275] sm:$0xff]
          %v302 = vld [vmem:[%s275 + $0x8] sm:$0xff]
          %v303 = vld [vmem:[%s275 + $0x10] sm:$0xff]
          %v304 = vld [vmem:[%s275 + $0x18] sm:$0xff]
          %vm305 = vcmask 130048
          %v307 = vsel %vm305, %v297, 0
          %v310 = vsel %vm305, %v298, 0
          %v313 = vsel %vm305, %v299, 0
          %v316 = vsel %vm305, %v300, 0
          %318 = vmatprep.subr.mxu0 %v302
          %319 = vmatpush1.msra.mxu0 %v301
          %320 = vmatprep.subr.mxu0 %v304
          %321 = vmatpush1.msra.mxu0 %v303
          %322 = vmatprep.subr.mxu0 0.0
          %323 = vmatpush1.msra.mxu0 0.0
          %324 = vmatprep.subr.mxu0 0.0
          %325 = vmatpush1.msra.mxu0 0.0
          %326 = vmatprep.subr.mxu0 0.0
          %327 = vmatpush1.msra.mxu0 0.0
          %328 = vmatprep.subr.mxu0 0.0
          %329 = vmatpush1.msra.mxu0 0.0
          %330 = vmatprep.subr.mxu0 0.0
          %331 = vmatpush1.msra.mxu0 0.0
          %332 = vmatprep.subr.mxu0 0.0
          %333 = vmatpush1.msra.mxu0 0.0
          %334 = vmatprep.subr.mxu0 0.0
          %335 = vmatpush1.msra.mxu0 0.0
          %336 = vmatprep.subr.mxu0 0.0
          %337 = vmatpush1.msra.mxu0 0.0
          %338 = vmatprep.subr.mxu0 0.0
          %339 = vmatpush1.msra.mxu0 0.0
          %340 = vmatprep.subr.mxu0 0.0
          %341 = vmatpush1.msra.mxu0 0.0
          %342 = vmatprep.subr.mxu0 0.0
          %343 = vmatpush1.msra.mxu0 0.0
          %344 = vmatprep.subr.mxu0 0.0
          %345 = vmatpush1.msra.mxu0 0.0
          %346 = vmatprep.subr.mxu0 0.0
          %347 = vmatpush1.msra.mxu0 0.0
          %348 = vmatprep.subr.mxu0 0.0
          %349 = vmatpush1.msra.mxu0 0.0
          %350 = vmatprep.subr.mxu0 0.0
          %351 = vmatpush1.msra.mxu0 0.0
          %352 = vmatprep.subr.mxu0 0.0
          %353 = vmatpush1.msra.mxu0 0.0
          %354 = vmatprep.subr.mxu0 0.0
          %355 = vmatpush1.msra.mxu0 0.0
          %356 = vmatprep.subr.mxu0 0.0
          %357 = vmatpush1.msra.mxu0 0.0
          %358 = vmatprep.subr.mxu0 0.0
          %359 = vmatpush1.msra.mxu0 0.0
          %360 = vmatprep.subr.mxu0 0.0
          %361 = vmatpush1.msra.mxu0 0.0
          %362 = vmatprep.subr.mxu0 0.0
          %363 = vmatpush1.msra.mxu0 0.0
          %364 = vmatprep.subr.mxu0 0.0
          %365 = vmatpush1.msra.mxu0 0.0
          %366 = vmatprep.subr.mxu0 0.0
          %367 = vmatpush1.msra.mxu0 0.0
          %368 = vmatprep.subr.mxu0 0.0
          %369 = vmatpush1.msra.mxu0 0.0
          %370 = vmatprep.subr.mxu0 0.0
          %371 = vmatpush1.msra.mxu0 0.0
          %372 = vmatprep.subr.mxu0 0.0
          %373 = vmatpush1.msra.mxu0 0.0
          %374 = vmatprep.subr.mxu0 0.0
          %375 = vmatpush1.msra.mxu0 0.0
          %376 = vmatprep.subr.mxu0 0.0
          %377 = vmatpush1.msra.mxu0 0.0
          %378 = vmatprep.subr.mxu0 0.0
          %379 = vmatpush1.msra.mxu0 0.0
          %380 = vmatprep.subr.mxu0 0.0
          %381 = vmatpush1.msra.mxu0 0.0
          %382 = vmatprep.mubr.f32.mxu0 0.0
          %383 = vmatmul.mubr.f32.gmra.mrb[0].mxu0 %v307
          %v384 = vpop.f32.mrb[0].mxu0
          %v385 = vadd.f32 0.0, %v384
          %v386 = vpop.f32.mrb[0].mxu0
          %v387 = vadd.f32 0.0, %v386
          %388 = vmatprep.mubr.f32.mxu0 0.0
          %389 = vmatmul.mubr.f32.gmra.mrb[0].mxu0 %v310
          %v390 = vpop.f32.mrb[0].mxu0
          %v391 = vadd.f32 0.0, %v390
          %v392 = vpop.f32.mrb[0].mxu0
          %v393 = vadd.f32 0.0, %v392
          %394 = vmatprep.mubr.f32.mxu0 0.0
          %395 = vmatmul.mubr.f32.gmra.mrb[0].mxu0 %v313
          %v396 = vpop.f32.mrb[0].mxu0
          %v397 = vadd.f32 0.0, %v396
          %v398 = vpop.f32.mrb[0].mxu0
          %v399 = vadd.f32 0.0, %v398
          %400 = vmatprep.mubr.f32.mxu0 0.0
          %401 = vmatmul.mubr.f32.gmra.mrb[0].mxu0 %v316
          %v402 = vpop.f32.mrb[0].mxu0
          %v403 = vadd.f32 0.0, %v402
          %v404 = vpop.f32.mrb[0].mxu0
          %v405 = vadd.f32 0.0, %v404
          %406 = vdwg.mxu0
          %s407 = smul.u32 %s25, 8
          %s408 = smul.addr %s407, 8
          %s409 = scalar_lea.vmem [#allocation2], %s408
          %410 = vst [vmem:[%s409] sm:$0xff] %v385
          %411 = vst [vmem:[%s409 + $0x8] sm:$0xff] %v387
          %412 = vst [vmem:[%s409 + $0x10] sm:$0xff] %v391
          %413 = vst [vmem:[%s409 + $0x18] sm:$0xff] %v393
          %414 = vst [vmem:[%s409 + $0x20] sm:$0xff] %v397
          %415 = vst [vmem:[%s409 + $0x28] sm:$0xff] %v399
          %416 = vst [vmem:[%s409 + $0x30] sm:$0xff] %v403
          %417 = vst [vmem:[%s409 + $0x38] sm:$0xff] %v405
          %v418 = vld [vmem:[#allocation3] sm:$0xff]
          %v419 = vld [vmem:[#allocation3 + $0x8] sm:$0xff]
          %v420 = vld [vmem:[#allocation3 + $0x10] sm:$0xff]
          %v421 = vld [vmem:[#allocation3 + $0x18] sm:$0xff]
          %v422 = vadd.f32 %v385, %v387
          %423 = vadd.xlane.f32.xlu0 %v422
          %v424 = vpop.xlane.xlu0 %423
          %v425 = vadd.f32 %v391, %v393
          %426 = vadd.xlane.f32.xlu0 %v425
          %v427 = vpop.xlane.xlu0 %426
          %v428 = vadd.f32 %v397, %v399
          %429 = vadd.xlane.f32.xlu0 %v428
          %v430 = vpop.xlane.xlu0 %429
          %v431 = vadd.f32 %v403, %v405
          %432 = vadd.xlane.f32.xlu0 %v431
          %v433 = vpop.xlane.xlu0 %432
          %v434 = vadd.f32 %v418, %v424
          %v435 = vadd.f32 %v419, %v427
          %v436 = vadd.f32 %v420, %v430
          %v437 = vadd.f32 %v421, %v433
          %vm438 = vcmask 7168
          %439 = vst.msk [vmem:[#allocation3] sm:$0xff] %vm438, %v434
          %440 = vst.msk [vmem:[#allocation3 + $0x8] sm:$0xff] %vm438, %v435
          %441 = vst.msk [vmem:[#allocation3 + $0x10] sm:$0xff] %vm438, %v436
          %442 = vst.msk [vmem:[#allocation3 + $0x18] sm:$0xff] %vm438, %v437
          %v443 = vld [vmem:[#allocation4] sm:$0xff]
          %v444 = vld [vmem:[#allocation4 + $0x8] sm:$0xff]
          %v445 = vld [vmem:[#allocation4 + $0x10] sm:$0xff]
          %v446 = vld [vmem:[#allocation4 + $0x18] sm:$0xff]
          %v447 = vmul.f32 %v385, %v385
          %v448 = vmul.f32 %v387, %v387
          %v449 = vmul.f32 %v391, %v391
          %v450 = vmul.f32 %v393, %v393
          %v451 = vmul.f32 %v397, %v397
          %v452 = vmul.f32 %v399, %v399
          %v453 = vmul.f32 %v403, %v403
          %v454 = vmul.f32 %v405, %v405
          %v455 = vadd.f32 %v447, %v448
          %456 = vadd.xlane.f32.xlu0 %v455
          %v457 = vpop.xlane.xlu0 %456
          %v458 = vadd.f32 %v449, %v450
          %459 = vadd.xlane.f32.xlu0 %v458
          %v460 = vpop.xlane.xlu0 %459
          %v461 = vadd.f32 %v451, %v452
          %462 = vadd.xlane.f32.xlu0 %v461
          %v463 = vpop.xlane.xlu0 %462
          %v464 = vadd.f32 %v453, %v454
          %465 = vadd.xlane.f32.xlu0 %v464
          %v466 = vpop.xlane.xlu0 %465
          %v467 = vadd.f32 %v443, %v457
          %v468 = vadd.f32 %v444, %v460
          %v469 = vadd.f32 %v445, %v463
          %v470 = vadd.f32 %v446, %v466
          %471 = vst.msk [vmem:[#allocation4] sm:$0xff] %vm438, %v467
          %472 = vst.msk [vmem:[#allocation4 + $0x8] sm:$0xff] %vm438, %v468
          %473 = vst.msk [vmem:[#allocation4 + $0x10] sm:$0xff] %vm438, %v469
          %474 = vst.msk [vmem:[#allocation4 + $0x18] sm:$0xff] %vm438, %v470
        $region52: #{tpu_custom_call.1} parent=43 // pred_fallthru
          _
        %p475 = scmp.eq.s32.totalorder %s24, 1
        // Predicated region
        $region53: #{tpu_custom_call.1} parent=43 // pred_check
          %p476 = pneg %p475
        $region54: #{tpu_custom_call.1} parent=43 // pred_check_branch
          %478 = sbr.rel (%p476) target = $region56
        $region55: #{tpu_custom_call.1} parent=43 // pred_region
          %s479 = smul.u32 %s25, 8
          %s480 = smul.addr %s479, 8
          %s481 = scalar_lea.vmem [#allocation2], %s480
          %v482 = vld [vmem:[%s481] sm:$0xff]
          %v483 = vld [vmem:[%s481 + $0x8] sm:$0xff]
          %v484 = vld [vmem:[%s481 + $0x10] sm:$0xff]
          %v485 = vld [vmem:[%s481 + $0x18] sm:$0xff]
          %v486 = vld [vmem:[%s481 + $0x20] sm:$0xff]
          %v487 = vld [vmem:[%s481 + $0x28] sm:$0xff]
          %v488 = vld [vmem:[%s481 + $0x30] sm:$0xff]
          %v489 = vld [vmem:[%s481 + $0x38] sm:$0xff]
          %v490 = vld [vmem:[#allocation3] sm:$0xff]
          %v491 = vld [vmem:[#allocation3 + $0x8] sm:$0xff]
          %v492 = vld [vmem:[#allocation3 + $0x10] sm:$0xff]
          %v493 = vld [vmem:[#allocation3 + $0x18] sm:$0xff]
          %v494 = vld [vmem:[#allocation4] sm:$0xff]
          %v495 = vld [vmem:[#allocation4 + $0x8] sm:$0xff]
          %v496 = vld [vmem:[#allocation4 + $0x10] sm:$0xff]
          %v497 = vld [vmem:[#allocation4 + $0x18] sm:$0xff]
          %v498 = vadd.f32 %v490, %v491
          %v499 = vadd.f32 %v498, %v492
          %v500 = vadd.f32 %v499, %v493
          %v501 = vadd.f32 %v494, %v495
          %v502 = vadd.f32 %v501, %v496
          %v503 = vadd.f32 %v502, %v497
          %v504 = vmul.f32 %v500, 0.00048828125
          %v505 = vmul.f32 %v503, 0.00048828125
          %v506 = vmul.f32 %v504, %v504
          %v507 = vsub.f32 %v505, %v506
          %v508 = vld [vmem:[%s4] sm:$0xff]
          %v509 = vadd.f32 %v507, 1e-05
          %v510 = vrsqrt.pop %v509
          %v511 = vmul.f32 %v508, %v510
          %v512 = vld [vmem:[%s5] sm:$0xff]
          %v513 = vmul.f32 %v504, %v511
          %v514 = vsub.f32 %v512, %v513
          %516 = vset.pattern.permute.xlu0 0
          %517 = vperm.xlu0 %516, %v511
          %v518 = vpop.permute.xlu0 %517
          %v520 = vmul.f32 %v482, %v518
          %v521 = vmul.f32 %v483, %v518
          %v522 = vmul.f32 %v484, %v518
          %v523 = vmul.f32 %v485, %v518
          %v524 = vmul.f32 %v486, %v518
          %v525 = vmul.f32 %v487, %v518
          %v526 = vmul.f32 %v488, %v518
          %v527 = vmul.f32 %v489, %v518
          %529 = vset.pattern.permute.xlu0 0
          %530 = vperm.xlu0 %529, %v514
          %v531 = vpop.permute.xlu0 %530
          %v533 = vadd.f32 %v520, %v531
          %v534 = vadd.f32 %v521, %v531
          %v535 = vadd.f32 %v522, %v531
          %v536 = vadd.f32 %v523, %v531
          %v537 = vadd.f32 %v524, %v531
          %v538 = vadd.f32 %v525, %v531
          %v539 = vadd.f32 %v526, %v531
          %v540 = vadd.f32 %v527, %v531
          %v541 = vmax.f32 %v533, 0.0
          %v542 = vmax.f32 %v534, 0.0
          %v543 = vmax.f32 %v535, 0.0
          %v544 = vmax.f32 %v536, 0.0
          %v545 = vmax.f32 %v537, 0.0
          %v546 = vmax.f32 %v538, 0.0
          %v547 = vmax.f32 %v539, 0.0
          %v548 = vmax.f32 %v540, 0.0
          %v549 = vld [vmem:[%s2] sm:$0xff]
          %v550 = vld [vmem:[%s2 + $0x8] sm:$0xff]
          %v551 = vld [vmem:[%s2 + $0x10] sm:$0xff]
          %v552 = vld [vmem:[%s3] sm:$0xff]
          %v553 = vld [vmem:[%s3 + $0x8] sm:$0xff]
          %v554 = vld [vmem:[%s3 + $0x10] sm:$0xff]
          %556 = vset.pattern.permute.xlu0 0
          %557 = vperm.xlu0 %556, %v552
          %v558 = vpop.permute.xlu0 %557
          %561 = vset.pattern.permute.xlu0 0
          %562 = vperm.xlu0 %561, %v553
          %v563 = vpop.permute.xlu0 %562
          %566 = vset.pattern.permute.xlu0 0
          %567 = vperm.xlu0 %566, %v554
          %v568 = vpop.permute.xlu0 %567
          %vm570 = vcmask 261120
          %v572 = vsel %vm570, %v549, 0
          %v575 = vsel %vm570, %v550, 0
          %v578 = vsel %vm570, %v551, 0
          %580 = vmatprep.subr.mxu0 %v542
          %581 = vmatpush1.msra.mxu0 %v541
          %582 = vmatprep.subr.mxu0 %v544
          %583 = vmatpush1.msra.mxu0 %v543
          %584 = vmatprep.subr.mxu0 %v546
          %585 = vmatpush1.msra.mxu0 %v545
          %586 = vmatprep.subr.mxu0 %v548
          %587 = vmatpush1.msra.mxu0 %v547
          %588 = vmatprep.subr.mxu0 0.0
          %589 = vmatpush1.msra.mxu0 0.0
          %590 = vmatprep.subr.mxu0 0.0
          %591 = vmatpush1.msra.mxu0 0.0
          %592 = vmatprep.subr.mxu0 0.0
          %593 = vmatpush1.msra.mxu0 0.0
          %594 = vmatprep.subr.mxu0 0.0
          %595 = vmatpush1.msra.mxu0 0.0
          %596 = vmatprep.subr.mxu0 0.0
          %597 = vmatpush1.msra.mxu0 0.0
          %598 = vmatprep.subr.mxu0 0.0
          %599 = vmatpush1.msra.mxu0 0.0
          %600 = vmatprep.subr.mxu0 0.0
          %601 = vmatpush1.msra.mxu0 0.0
          %602 = vmatprep.subr.mxu0 0.0
          %603 = vmatpush1.msra.mxu0 0.0
          %604 = vmatprep.subr.mxu0 0.0
          %605 = vmatpush1.msra.mxu0 0.0
          %606 = vmatprep.subr.mxu0 0.0
          %607 = vmatpush1.msra.mxu0 0.0
          %608 = vmatprep.subr.mxu0 0.0
          %609 = vmatpush1.msra.mxu0 0.0
          %610 = vmatprep.subr.mxu0 0.0
          %611 = vmatpush1.msra.mxu0 0.0
          %612 = vmatprep.subr.mxu0 0.0
          %613 = vmatpush1.msra.mxu0 0.0
          %614 = vmatprep.subr.mxu0 0.0
          %615 = vmatpush1.msra.mxu0 0.0
          %616 = vmatprep.subr.mxu0 0.0
          %617 = vmatpush1.msra.mxu0 0.0
          %618 = vmatprep.subr.mxu0 0.0
          %619 = vmatpush1.msra.mxu0 0.0
          %620 = vmatprep.subr.mxu0 0.0
          %621 = vmatpush1.msra.mxu0 0.0
          %622 = vmatprep.subr.mxu0 0.0
          %623 = vmatpush1.msra.mxu0 0.0
          %624 = vmatprep.subr.mxu0 0.0
          %625 = vmatpush1.msra.mxu0 0.0
          %626 = vmatprep.subr.mxu0 0.0
          %627 = vmatpush1.msra.mxu0 0.0
          %628 = vmatprep.subr.mxu0 0.0
          %629 = vmatpush1.msra.mxu0 0.0
          %630 = vmatprep.subr.mxu0 0.0
          %631 = vmatpush1.msra.mxu0 0.0
          %632 = vmatprep.subr.mxu0 0.0
          %633 = vmatpush1.msra.mxu0 0.0
          %634 = vmatprep.subr.mxu0 0.0
          %635 = vmatpush1.msra.mxu0 0.0
          %636 = vmatprep.subr.mxu0 0.0
          %637 = vmatpush1.msra.mxu0 0.0
          %638 = vmatprep.subr.mxu0 0.0
          %639 = vmatpush1.msra.mxu0 0.0
          %640 = vmatprep.subr.mxu0 0.0
          %641 = vmatpush1.msra.mxu0 0.0
          %642 = vmatprep.subr.mxu0 0.0
          %643 = vmatpush1.msra.mxu0 0.0
          %644 = vmatprep.mubr.f32.mxu0 0.0
          %645 = vmatmul.mubr.f32.gmra.mrb[0].mxu0 %v572
          %v646 = vpop.f32.mrb[0].mxu0
          %v647 = vadd.f32 %v558, %v646
          %v648 = vpop.f32.mrb[0].mxu0
          %v649 = vadd.f32 %v558, %v648
          %650 = vmatprep.mubr.f32.mxu0 0.0
          %651 = vmatmul.mubr.f32.gmra.mrb[0].mxu0 %v575
          %v652 = vpop.f32.mrb[0].mxu0
          %v653 = vadd.f32 %v563, %v652
          %v654 = vpop.f32.mrb[0].mxu0
          %v655 = vadd.f32 %v563, %v654
          %656 = vmatprep.mubr.f32.mxu0 0.0
          %657 = vmatmul.mubr.f32.gmra.mrb[0].mxu0 %v578
          %v658 = vpop.f32.mrb[0].mxu0
          %v659 = vadd.f32 %v568, %v658
          %v660 = vpop.f32.mrb[0].mxu0
          %v661 = vadd.f32 %v568, %v660
          %662 = vdwg.mxu0
          %663 = vst [vmem:[%s268] sm:$0xff] %v647
          %664 = vst [vmem:[%s268 + $0x8] sm:$0xff] %v649
          %665 = vst [vmem:[%s268 + $0x10] sm:$0xff] %v653
          %666 = vst [vmem:[%s268 + $0x18] sm:$0xff] %v655
          %667 = vst [vmem:[%s268 + $0x20] sm:$0xff] %v659
          %668 = vst [vmem:[%s268 + $0x28] sm:$0xff] %v661
        $region56: #{tpu_custom_call.1} parent=43 // pred_fallthru
          _
        %s669 = sand.u32 %s177, 1
        %s670 = scalar_lea.sflag [#allocation6], %s669
        %s671 = sand.u32 %s177, 1
        %s672 = smul.addr %s671, 48
        %s673 = scalar_lea.vmem [#allocation5], %s672
        // Predicated region
        $region57: #{tpu_custom_call.1} parent=43 // pred_check
          %p674 = pneg %p187
        $region58: #{tpu_custom_call.1} parent=43 // pred_check_branch
          %676 = sbr.rel (%p674) target = $region60
        $region59: #{tpu_custom_call.1} parent=43 // pred_region
          %s677 = smul.u32 %s24, %s25
          %s679 = ssub.s32 768, 768
          %680 = vsyncadd %s670, %s679
          %s681 = smul.addr %s677, 6
          %s682 = smul.addr %s681, 128
          %s683 = scalar_lea.hbm %s6, %s682
          %s684 = sshll.u32 %s673, 4
          %s685 = int_to_ptr.vmem [resolvable:$true] %s684
          %690 = dma.vmem_to_hbm [thread:$0]  %s685, 768, %s683, %s670, 256, 256, 16
        $region60: #{tpu_custom_call.1} parent=43 // pred_fallthru
          _
      $region44: #{tpu_custom_call.1} parent=5 // pred_fallthru
        _
      %p691 = scmp.le.s32.totalorder 2, %s15
      // Predicated region
      $region61: #{tpu_custom_call.1} parent=5 // pred_check
        %p692 = pneg %p691
      $region62: #{tpu_custom_call.1} parent=5 // pred_check_branch
        %694 = sbr.rel (%p692) target = $region64
      $region63: #{tpu_custom_call.1} parent=5 // pred_region
        %s695 = ssub.s32 %s15, 2
        // Predicated region
        $region65: #{tpu_custom_call.1} parent=63 // pred_check
          %p696 = pneg %p193
        $region66: #{tpu_custom_call.1} parent=63 // pred_check_branch
          %698 = sbr.rel (%p696) target = $region68
        $region67: #{tpu_custom_call.1} parent=63 // pred_region
          %s699 = sand.u32 %s178, 1
          %s700 = scalar_lea.sflag [#allocation6], %s699
          %s701 = sand.u32 %s178, 1
          %s702 = smul.addr %s701, 48
          %s703 = scalar_lea.vmem [#allocation5], %s702
          %704 = dma.done %s700, 768
        $region68: #{tpu_custom_call.1} parent=63 // pred_fallthru
          _
      $region64: #{tpu_custom_call.1} parent=5 // pred_fallthru
        _
    $region6: #{tpu_custom_call.1} parent=1 // loop_footer
      %s19 = sadd.s32 1, %s15
    $region7: #{tpu_custom_call.1} parent=1 // loop_footer_branch
      %14 = sbr.rel target = $region3
    $region8: #{tpu_custom_call.1} parent=1 // loop_exit
      _
    %705 = vsyncpa [#allocation6], 1
    %s706 = scalar_lea.sflag [#allocation6], 1
    %707 = vsyncpa %s706, 1

</llo_original>
